<compile_context>
chip_gen: v5e
topology: v5e:2x2
jax: 0.10.0
libtpu: 0.0.40
codegen_flags: <defaults>
</compile_context>

<pallas_src>
import jax
import jax.numpy as jnp
from jax import lax
from jax.experimental import pallas as pl
from jax.experimental.pallas import tpu as pltpu


def _make_kernel(gelu_approximate):
    def gelu(x):
        # approximate=True -> tanh GELU (EUP slot); False -> exact erf (VALU polynomial).
        return jax.nn.gelu(x, approximate=gelu_approximate)

    def dino_head_kernel(x_ref, w1_ref, b1_ref, w2_ref, b2_ref, w3_ref, b3_ref, o_ref):
        # x tile arrives as bf16 (cast in wrapper) -> feed the MXU directly, f32 acc.
        h = jnp.dot(x_ref[...], w1_ref[...],
                    preferred_element_type=jnp.float32) + b1_ref[...]
        h = gelu(h)

        h = jnp.dot(h.astype(jnp.bfloat16), w2_ref[...],
                    preferred_element_type=jnp.float32) + b2_ref[...]
        h = gelu(h)

        z = jnp.dot(h.astype(jnp.bfloat16), w3_ref[...],
                    preferred_element_type=jnp.float32) + b3_ref[...]

        # F.normalize(z, p=2, dim=-1): z / max(||z||, 1e-12) == z * rsqrt(max(||z||^2, 1e-24))
        s = jnp.sum(z * z, axis=-1, keepdims=True)
        inv = lax.rsqrt(jnp.maximum(s, 1e-24))      # EUP path; padded zero rows stay 0
        o_ref[...] = (z * inv).astype(o_ref.dtype)

    return dino_head_kernel


def _round_up(a, m):
    return (a + m - 1) // m * m


def _vmem_capacity_bytes():
    try:
        return int(pltpu.get_tpu_info().vmem_capacity_bytes)
    except Exception:
        return 64 << 20   # conservative: v7x per-TensorCore VMEM


def dino_head_forward(x, params, *, tm=512, gelu_approximate=True):
    """Fused MLP + L2-normalize. x: (B, in_dim) f32. Returns (x_proj, x)."""
    w1, b1, w2, b2, w3, b3 = params
    B, in_dim = x.shape
    hidden_dim = w1.shape[1]
    bneck = w3.shape[1]

    # Weights live resident in VMEM across the whole grid -> cast to bf16 once.
    w1b = w1.astype(jnp.bfloat16)
    w2b = w2.astype(jnp.bfloat16)
    w3b = w3.astype(jnp.bfloat16)
    b1r = b1.reshape(1, -1).astype(jnp.float32)
    b2r = b2.reshape(1, -1).astype(jnp.float32)
    b3r = b3.reshape(1, -1).astype(jnp.float32)

    # Batch tile: multiple of 16 (bf16 sublane packing), no larger than (padded) B.
    # Keep >=2 grid tiles when B allows so v7x's two TensorCores both get work,
    # and so padding is at most one tile.
    tm = max(16, min(tm, _round_up(B, 16)))
    if B > 16:
        two_tile_tm = _round_up(pl.cdiv(_round_up(B, 16), 2), 16)
        tm = min(tm, two_tile_tm)
    Bp = _round_up(B, tm)

    # bf16 cast (needed anyway for the MXU) with the tail padding fused in.
    x_bf = x.astype(jnp.bfloat16)
    x_in = x_bf if Bp == B else jnp.pad(x_bf, ((0, Bp - B), (0, 0)))

    grid = (Bp // tm,)

    # VMEM budget: single-buffered bf16 weights + f32 biases, double-buffered bf16 x
    # tiles and f32 out tiles, plus the (TM, hidden) f32 GELU intermediates.
    weight_bytes = 2 * (in_dim * hidden_dim + hidden_dim * hidden_dim + hidden_dim * bneck)
    bias_bytes = 4 * (2 * hidden_dim + bneck)
    act_bytes = (2 * 2 * tm * in_dim            # x tiles, bf16, double-buffered
                 + 2 * 4 * tm * bneck           # out tiles, f32, double-buffered
                 + 2 * 4 * tm * hidden_dim      # two live f32 (TM, hidden) intermediates
                 + 2 * tm * hidden_dim)         # bf16 cast of h
    vmem_limit = int(1.3 * (weight_bytes + bias_bytes + act_bytes)) + (4 << 20)
    vmem_cap = int(0.9 * _vmem_capacity_bytes())
    vmem_limit = min(max(vmem_limit, 16 << 20), vmem_cap)

    x_spec = pl.BlockSpec((tm, in_dim), lambda i: (i, 0))
    o_spec = pl.BlockSpec((tm, bneck), lambda i: (i, 0))

    def resident(shape):
        # Same block index for every grid step -> stays in VMEM, no re-DMA.
        # Buffered(1): single buffer (default pipeline would still allocate 2).
        return pl.BlockSpec(shape, lambda i: (0, 0), pipeline_mode=pl.Buffered(1))

    kernel = _make_kernel(gelu_approximate)

    x_proj = pl.pallas_call(
        kernel,
        out_shape=jax.ShapeDtypeStruct((Bp, bneck), x.dtype),
        grid=grid,
        in_specs=[
            x_spec,
            resident(w1b.shape), resident(b1r.shape),
            resident(w2b.shape), resident(b2r.shape),
            resident(w3b.shape), resident(b3r.shape),
        ],
        out_specs=o_spec,
        compiler_params=pltpu.CompilerParams(
            dimension_semantics=("parallel",),   # v7x: shard batch tiles across both TCs
            vmem_limit_bytes=vmem_limit,
        ),
    )(x_in, w1b, b1r, w2b, b2r, w3b, b3r)

    if Bp != B:
        x_proj = x_proj[:B]
    return x_proj, x


def init_params(key, in_dim, hidden_dim, bottleneck_dim, std=0.02):
    """Deterministic trunc-normal(std=0.02) weights, zero biases (matches _init_weights)."""
    k1, k2, k3 = jax.random.split(key, 3)

    def tn(k, shape):
        # torch trunc_normal_(std=0.02) truncates at +/-2 absolute (~100 sigma here).
        return jax.random.truncated_normal(k, -2.0, 2.0, shape, jnp.float32) * std

    w1 = tn(k1, (in_dim, hidden_dim))
    b1 = jnp.zeros((hidden_dim,), jnp.float32)
    w2 = tn(k2, (hidden_dim, hidden_dim))
    b2 = jnp.zeros((hidden_dim,), jnp.float32)
    w3 = tn(k3, (hidden_dim, bottleneck_dim))
    b3 = jnp.zeros((bottleneck_dim,), jnp.float32)
    return (w1, b1, w2, b2, w3, b3)


def reference_forward(x, params):
    """Pure-JAX f32 reference with PyTorch semantics (exact erf GELU, f32 matmuls)."""
    w1, b1, w2, b2, w3, b3 = params
    h = jax.nn.gelu(x @ w1 + b1, approximate=False)
    h = jax.nn.gelu(h @ w2 + b2, approximate=False)
    z = h @ w3 + b3
    denom = jnp.maximum(jnp.sqrt(jnp.sum(z * z, axis=-1, keepdims=True)), 1e-12)
    return z / denom, x


if __name__ == "__main__":
    # Small shapes consistent with the module (in -> hidden -> hidden -> bottleneck).
    # B=44 exercises the >=2-tile selection (tm shrinks to 32 -> grid=2) and padding.
    B, IN_DIM, HIDDEN, BOTTLENECK = 44, 64, 256, 64

    key = jax.random.PRNGKey(0)
    kx, kp = jax.random.split(key)
    x = jax.random.normal(kx, (B, IN_DIM), jnp.float32)
    params = init_params(kp, IN_DIM, HIDDEN, BOTTLENECK)

    x_proj, x_out = dino_head_forward(x, params)
    jax.block_until_ready(x_proj)
    jax.block_until_ready(x_out)

    ref_proj, ref_x = reference_forward(x, params)
    assert x_proj.shape == (B, BOTTLENECK)
    assert x_out.shape == (B, IN_DIM)
    # bf16 matmul inputs + tanh-approx GELU (f32 accumulation) vs. f32/erf reference.
    assert jnp.allclose(x_proj, ref_proj, atol=2e-2, rtol=2e-2), (
        float(jnp.max(jnp.abs(x_proj - ref_proj))))
    assert jnp.allclose(x_out, ref_x)

    print("KERNEL_OK")
</pallas_src>

<mosaic_0001>
module attributes {stable_mosaic.version = 11 : i64} {
  func.func @dino_head_kernel(%arg0: i32, %arg1: memref<32x64xbf16, #tpu.memory_space<vmem>>, %arg2: memref<64x256xbf16, #tpu.memory_space<vmem>>, %arg3: memref<1x256xf32, #tpu.memory_space<vmem>>, %arg4: memref<256x256xbf16, #tpu.memory_space<vmem>>, %arg5: memref<1x256xf32, #tpu.memory_space<vmem>>, %arg6: memref<256x64xbf16, #tpu.memory_space<vmem>>, %arg7: memref<1x64xf32, #tpu.memory_space<vmem>>, %arg8: memref<32x64xf32, #tpu.memory_space<vmem>>) attributes {dimension_semantics = [#tpu.dimension_semantics<parallel>], iteration_bounds = array<i64: 2>, scalar_prefetch = 0 : i64, scratch_operands = 0 : i64, tpu.core_type = #tpu.core_type<tc>, window_params = [{transform_indices = @transform_0, window_bounds = array<i64: 32, 64>}, {pipeline_mode = #tpu.pipeline_mode<synchronous>, transform_indices = @transform_1, window_bounds = array<i64: 64, 256>}, {pipeline_mode = #tpu.pipeline_mode<synchronous>, transform_indices = @transform_2, window_bounds = array<i64: 1, 256>}, {pipeline_mode = #tpu.pipeline_mode<synchronous>, transform_indices = @transform_3, window_bounds = array<i64: 256, 256>}, {pipeline_mode = #tpu.pipeline_mode<synchronous>, transform_indices = @transform_4, window_bounds = array<i64: 1, 256>}, {pipeline_mode = #tpu.pipeline_mode<synchronous>, transform_indices = @transform_5, window_bounds = array<i64: 256, 64>}, {pipeline_mode = #tpu.pipeline_mode<synchronous>, transform_indices = @transform_6, window_bounds = array<i64: 1, 64>}, {transform_indices = @transform_7, window_bounds = array<i64: 32, 64>}]} {
    %c0 = arith.constant 0 : index
    %c0_0 = arith.constant 0 : index
    %0 = vector.load %arg1[%c0, %c0_0] : memref<32x64xbf16, #tpu.memory_space<vmem>>, vector<32x64xbf16>
    %c0_1 = arith.constant 0 : index
    %c0_2 = arith.constant 0 : index
    %1 = vector.load %arg2[%c0_1, %c0_2] : memref<64x256xbf16, #tpu.memory_space<vmem>>, vector<64x256xbf16>
    %cst = arith.constant dense<0.000000e+00> : vector<32x256xf32>
    %2 = tpu.matmul %0, %1, %cst {dimension_numbers = #tpu.dot_dimension_numbers<[1], [0], [0], [1], [0, 0, 1, 1], [], []>} : vector<32x64xbf16>, vector<64x256xbf16>, vector<32x256xf32> -> vector<32x256xf32>
    %c0_3 = arith.constant 0 : index
    %c0_4 = arith.constant 0 : index
    %3 = vector.load %arg3[%c0_3, %c0_4] : memref<1x256xf32, #tpu.memory_space<vmem>>, vector<1x256xf32>
    %4 = vector.broadcast %3 : vector<1x256xf32> to vector<32x256xf32>
    %5 = arith.addf %2, %4 : vector<32x256xf32>
    %6 = arith.mulf %5, %5 : vector<32x256xf32>
    %7 = arith.mulf %5, %6 : vector<32x256xf32>
    %cst_5 = arith.constant 4.471500e-02 : f32
    %8 = vector.broadcast %cst_5 : f32 to vector<32x256xf32>
    %9 = arith.mulf %8, %7 : vector<32x256xf32>
    %10 = arith.addf %5, %9 : vector<32x256xf32>
    %cst_6 = arith.constant 0.797884583 : f32
    %11 = vector.broadcast %cst_6 : f32 to vector<32x256xf32>
    %12 = arith.mulf %11, %10 : vector<32x256xf32>
    %13 = math.tanh %12 : vector<32x256xf32>
    %cst_7 = arith.constant 1.000000e+00 : f32
    %14 = vector.broadcast %cst_7 : f32 to vector<32x256xf32>
    %15 = arith.addf %14, %13 : vector<32x256xf32>
    %cst_8 = arith.constant 5.000000e-01 : f32
    %16 = vector.broadcast %cst_8 : f32 to vector<32x256xf32>
    %17 = arith.mulf %16, %15 : vector<32x256xf32>
    %18 = arith.mulf %5, %17 : vector<32x256xf32>
    %19 = arith.truncf %18 : vector<32x256xf32> to vector<32x256xbf16>
    %c0_9 = arith.constant 0 : index
    %c0_10 = arith.constant 0 : index
    %20 = vector.load %arg4[%c0_9, %c0_10] : memref<256x256xbf16, #tpu.memory_space<vmem>>, vector<256x256xbf16>
    %cst_11 = arith.constant dense<0.000000e+00> : vector<32x256xf32>
    %21 = tpu.matmul %19, %20, %cst_11 {dimension_numbers = #tpu.dot_dimension_numbers<[1], [0], [0], [1], [0, 0, 1, 1], [], []>} : vector<32x256xbf16>, vector<256x256xbf16>, vector<32x256xf32> -> vector<32x256xf32>
    %c0_12 = arith.constant 0 : index
    %c0_13 = arith.constant 0 : index
    %22 = vector.load %arg5[%c0_12, %c0_13] : memref<1x256xf32, #tpu.memory_space<vmem>>, vector<1x256xf32>
    %23 = vector.broadcast %22 : vector<1x256xf32> to vector<32x256xf32>
    %24 = arith.addf %21, %23 : vector<32x256xf32>
    %25 = arith.mulf %24, %24 : vector<32x256xf32>
    %26 = arith.mulf %24, %25 : vector<32x256xf32>
    %cst_14 = arith.constant 4.471500e-02 : f32
    %27 = vector.broadcast %cst_14 : f32 to vector<32x256xf32>
    %28 = arith.mulf %27, %26 : vector<32x256xf32>
    %29 = arith.addf %24, %28 : vector<32x256xf32>
    %cst_15 = arith.constant 0.797884583 : f32
    %30 = vector.broadcast %cst_15 : f32 to vector<32x256xf32>
    %31 = arith.mulf %30, %29 : vector<32x256xf32>
    %32 = math.tanh %31 : vector<32x256xf32>
    %cst_16 = arith.constant 1.000000e+00 : f32
    %33 = vector.broadcast %cst_16 : f32 to vector<32x256xf32>
    %34 = arith.addf %33, %32 : vector<32x256xf32>
    %cst_17 = arith.constant 5.000000e-01 : f32
    %35 = vector.broadcast %cst_17 : f32 to vector<32x256xf32>
    %36 = arith.mulf %35, %34 : vector<32x256xf32>
    %37 = arith.mulf %24, %36 : vector<32x256xf32>
    %38 = arith.truncf %37 : vector<32x256xf32> to vector<32x256xbf16>
    %c0_18 = arith.constant 0 : index
    %c0_19 = arith.constant 0 : index
    %39 = vector.load %arg6[%c0_18, %c0_19] : memref<256x64xbf16, #tpu.memory_space<vmem>>, vector<256x64xbf16>
    %cst_20 = arith.constant dense<0.000000e+00> : vector<32x64xf32>
    %40 = tpu.matmul %38, %39, %cst_20 {dimension_numbers = #tpu.dot_dimension_numbers<[1], [0], [0], [1], [0, 0, 1, 1], [], []>} : vector<32x256xbf16>, vector<256x64xbf16>, vector<32x64xf32> -> vector<32x64xf32>
    %c0_21 = arith.constant 0 : index
    %c0_22 = arith.constant 0 : index
    %41 = vector.load %arg7[%c0_21, %c0_22] : memref<1x64xf32, #tpu.memory_space<vmem>>, vector<1x64xf32>
    %42 = vector.broadcast %41 : vector<1x64xf32> to vector<32x64xf32>
    %43 = arith.addf %40, %42 : vector<32x64xf32>
    %44 = arith.mulf %43, %43 : vector<32x64xf32>
    %cst_23 = arith.constant dense<0.000000e+00> : vector<32xf32>
    %45 = vector.multi_reduction <add>, %44, %cst_23 [1] : vector<32x64xf32> to vector<32xf32>
    %46 = vector.shape_cast %45 : vector<32xf32> to vector<32x1xf32>
    %cst_24 = arith.constant 1.000000e-24 : f32
    %47 = vector.broadcast %cst_24 : f32 to vector<32x1xf32>
    %48 = arith.maximumf %46, %47 : vector<32x1xf32>
    %49 = math.rsqrt %48 : vector<32x1xf32>
    %50 = vector.broadcast %49 : vector<32x1xf32> to vector<32x64xf32>
    %51 = arith.mulf %43, %50 : vector<32x64xf32>
    %c0_25 = arith.constant 0 : index
    %c0_26 = arith.constant 0 : index
    %52 = vector.load %arg8[%c0_25, %c0_26] : memref<32x64xf32, #tpu.memory_space<vmem>>, vector<32x64xf32>
    tpu.vector_store %arg8[%c0_25, %c0_26], %51 {strides = array<i32>} : memref<32x64xf32, #tpu.memory_space<vmem>>, vector<32x64xf32>,
    return
  }
  func.func @transform_0(%arg0: i32) -> (i32, i32) {
    %c0_i32 = arith.constant 0 : i32
    %c0_i32_0 = arith.constant 0 : i32
    return %arg0, %c0_i32 : i32, i32
  }
  func.func @transform_1(%arg0: i32) -> (i32, i32) {
    %c0_i32 = arith.constant 0 : i32
    %c0_i32_0 = arith.constant 0 : i32
    %c0_i32_1 = arith.constant 0 : i32
    return %c0_i32, %c0_i32_0 : i32, i32
  }
  func.func @transform_2(%arg0: i32) -> (i32, i32) {
    %c0_i32 = arith.constant 0 : i32
    %c0_i32_0 = arith.constant 0 : i32
    %c0_i32_1 = arith.constant 0 : i32
    return %c0_i32, %c0_i32_0 : i32, i32
  }
  func.func @transform_3(%arg0: i32) -> (i32, i32) {
    %c0_i32 = arith.constant 0 : i32
    %c0_i32_0 = arith.constant 0 : i32
    %c0_i32_1 = arith.constant 0 : i32
    return %c0_i32, %c0_i32_0 : i32, i32
  }
  func.func @transform_4(%arg0: i32) -> (i32, i32) {
    %c0_i32 = arith.constant 0 : i32
    %c0_i32_0 = arith.constant 0 : i32
    %c0_i32_1 = arith.constant 0 : i32
    return %c0_i32, %c0_i32_0 : i32, i32
  }
  func.func @transform_5(%arg0: i32) -> (i32, i32) {
    %c0_i32 = arith.constant 0 : i32
    %c0_i32_0 = arith.constant 0 : i32
    %c0_i32_1 = arith.constant 0 : i32
    return %c0_i32, %c0_i32_0 : i32, i32
  }
  func.func @transform_6(%arg0: i32) -> (i32, i32) {
    %c0_i32 = arith.constant 0 : i32
    %c0_i32_0 = arith.constant 0 : i32
    %c0_i32_1 = arith.constant 0 : i32
    return %c0_i32, %c0_i32_0 : i32, i32
  }
  func.func @transform_7(%arg0: i32) -> (i32, i32) {
    %c0_i32 = arith.constant 0 : i32
    %c0_i32_0 = arith.constant 0 : i32
    return %arg0, %c0_i32 : i32, i32
  }
}

</mosaic_0001>

<llo_original>
// kernel: tpu_custom_call.1
$region0: #{tpu_custom_call.1}
  #allocation0 [shape = 'u32[]', space=smem, size = 0x4, offset = 0x4, fixed_abs, tag = 'smem constant byte address 0x4 - core index']
  #allocation1 [shape = 'u32[72,128]{1,0:T(1,128)}', space=vmem, size = 0x9000, scoped, tag = 'internal scratch']
  %s0 = inlined_call_operand.vmem [shape: bf16[64,64], index: 0, kind: input, shape index: {}]
  %s1 = inlined_call_operand.vmem [shape: bf16[64,256], index: 1, kind: input, shape index: {}]
  %s2 = inlined_call_operand.vmem [shape: f32[1,256], index: 2, kind: input, shape index: {}]
  %s3 = inlined_call_operand.hbm [shape: bf16[256,256], index: 3, kind: input, shape index: {}]
  %s4 = inlined_call_operand.vmem [shape: f32[1,256], index: 4, kind: input, shape index: {}]
  %s5 = inlined_call_operand.vmem [shape: bf16[256,64], index: 5, kind: input, shape index: {}]
  %s6 = inlined_call_operand.vmem [shape: f32[1,64], index: 6, kind: input, shape index: {}]
  %s7 = inlined_call_operand.hbm [shape: f32[64,64], index: 7, kind: output, shape index: {}]
  %s8 = sld [smem:[#allocation0]]
  $region65: #{tpu_custom_call.1} parent=0
    _
  %s10 = ssub.s32 1, %s8
  %s11 = scalar_select 0, %s10, %s8
  $region1: #{tpu_custom_call.1} parent=0
    #allocation2 [shape = 'u8[131072]{0}', space=vmem, size = 0x20000, scoped, tag = 'input window, operand 3, single buffered']
    #allocation3 [shape = 's32[2]{0}', space=sflag, size = 0x8, scoped, tag = 'scoped memory for tpu_custom_call.1']
    #allocation4 [shape = 's32[2]{0}', space=sflag, size = 0x8, scoped, tag = 'scoped memory for tpu_custom_call.1']
    #allocation5 [shape = 'u8[32768]{0}', space=vmem, size = 0x8000, scoped, tag = 'output window, operand 0']
    %12 = vsyncpa [#allocation3], 0
    %13 = vsyncpa [#allocation4], 0
    %s14 = scalar_lea.sflag [#allocation4], 1
    %15 = vsyncpa %s14, 0
    loop: start=0, step=1, limit=4
    $region2: #{tpu_custom_call.1} parent=1 // loop_pre_header
      _
    $region3: #{tpu_custom_call.1} parent=1 // loop_header
      %s17 = sphi 0, %s21
      %p18 = scmp.ge.s32.totalorder %s17, 4
      %s27 = sphi 0, %s29
      %s30 = sphi 0, %s27
      %s31 = sphi 0, %s30
      %s47 = sphi 0, %s31
      %s51 = sphi 0, %s51
      %s53 = sphi 0, %s51
      %s54 = sphi 0, %s53
      %s68 = sphi 0, %s54
      %s72 = sphi 0, %s72
      %s74 = sphi 0, %s72
      %s75 = sphi 0, %s74
      %s89 = sphi 0, %s75
      %s93 = sphi 0, %s93
      %s95 = sphi 0, %s93
      %s96 = sphi 0, %s95
      %s110 = sphi 0, %s96
      %s114 = sphi 0, %s114
      %s116 = sphi 0, %s114
      %s117 = sphi 0, %s116
      %s131 = sphi 0, %s117
      %s135 = sphi 0, %s135
      %s137 = sphi 0, %s135
      %s138 = sphi 0, %s137
      %s152 = sphi 0, %s138
      %s156 = sphi 0, %s156
      %s158 = sphi 0, %s156
      %s159 = sphi 0, %s158
      %s173 = sphi 0, %s159
      %s179 = sphi 0, %s181
      %s182 = sphi 0, %s179
      %s183 = sphi 0, %s182
      %s199 = sphi 0, %s183
    $region4: #{tpu_custom_call.1} parent=1 // loop_header_branch
      %20 = sbr.rel (%p18) target = $region8
    $region5: #{tpu_custom_call.1} parent=1 // loop_body
      %s22 = ssub.s32 %s17, 1
      %s23 = ssub.s32 %s17, 2
      %s24 = sadd.s32 %s17, 1
      %s25 = ssub.s32 %s17, %s24
      %p26 = scmp.eq.s32.totalorder %s25, 0
      %s28 = sadd.s32 %s27, 1
      %s29 = scalar_select %p26, %s27, %s28
      %p32 = pneg %p26
      %p33 = scmp.eq.s32.totalorder %s17, 1
      %p34 = por %p32, %p33
      %p35 = scmp.ne.s32.totalorder %s27, %s30
      %p36 = scmp.eq.s32.totalorder %s17, 0
      %p37 = por %p35, %p36
      %p38 = scmp.ne.s32.totalorder %s27, %s30
      %p39 = scmp.eq.s32.totalorder %s22, 1
      %p40 = por %p38, %p39
      %p41 = scmp.ne.s32.totalorder %s30, %s31
      %p42 = scmp.eq.s32.totalorder %s22, 0
      %p43 = por %p41, %p42
      %p44 = scmp.ne.s32.totalorder %s30, %s31
      %p45 = scmp.eq.s32.totalorder %s23, 1
      %p46 = por %p44, %p45
      %p48 = scmp.ne.s32.totalorder %s31, %s47
      %p49 = scmp.eq.s32.totalorder %s23, 0
      %p50 = por %p48, %p49
      %s52 = sadd.s32 %s51, 1
      %p55 = scmp.eq.s32.totalorder %s17, 1
      %p56 = scmp.ne.s32.totalorder %s51, %s53
      %p57 = scmp.eq.s32.totalorder %s17, 0
      %p58 = por %p56, %p57
      %p59 = scmp.ne.s32.totalorder %s51, %s53
      %p60 = scmp.eq.s32.totalorder %s22, 1
      %p61 = por %p59, %p60
      %p62 = scmp.ne.s32.totalorder %s53, %s54
      %p63 = scmp.eq.s32.totalorder %s22, 0
      %p64 = por %p62, %p63
      %p65 = scmp.ne.s32.totalorder %s53, %s54
      %p66 = scmp.eq.s32.totalorder %s23, 1
      %p67 = por %p65, %p66
      %p69 = scmp.ne.s32.totalorder %s54, %s68
      %p70 = scmp.eq.s32.totalorder %s23, 0
      %p71 = por %p69, %p70
      %s73 = sadd.s32 %s72, 1
      %p76 = scmp.eq.s32.totalorder %s17, 1
      %p77 = scmp.ne.s32.totalorder %s72, %s74
      %p78 = scmp.eq.s32.totalorder %s17, 0
      %p79 = por %p77, %p78
      %p80 = scmp.ne.s32.totalorder %s72, %s74
      %p81 = scmp.eq.s32.totalorder %s22, 1
      %p82 = por %p80, %p81
      %p83 = scmp.ne.s32.totalorder %s74, %s75
      %p84 = scmp.eq.s32.totalorder %s22, 0
      %p85 = por %p83, %p84
      %p86 = scmp.ne.s32.totalorder %s74, %s75
      %p87 = scmp.eq.s32.totalorder %s23, 1
      %p88 = por %p86, %p87
      %p90 = scmp.ne.s32.totalorder %s75, %s89
      %p91 = scmp.eq.s32.totalorder %s23, 0
      %p92 = por %p90, %p91
      %s94 = sadd.s32 %s93, 1
      %p97 = scmp.eq.s32.totalorder %s17, 1
      %p98 = scmp.ne.s32.totalorder %s93, %s95
      %p99 = scmp.eq.s32.totalorder %s17, 0
      %p100 = por %p98, %p99
      %p101 = scmp.ne.s32.totalorder %s93, %s95
      %p102 = scmp.eq.s32.totalorder %s22, 1
      %p103 = por %p101, %p102
      %p104 = scmp.ne.s32.totalorder %s95, %s96
      %p105 = scmp.eq.s32.totalorder %s22, 0
      %p106 = por %p104, %p105
      %p107 = scmp.ne.s32.totalorder %s95, %s96
      %p108 = scmp.eq.s32.totalorder %s23, 1
      %p109 = por %p107, %p108
      %p111 = scmp.ne.s32.totalorder %s96, %s110
      %p112 = scmp.eq.s32.totalorder %s23, 0
      %p113 = por %p111, %p112
      %s115 = sadd.s32 %s114, 1
      %p118 = scmp.eq.s32.totalorder %s17, 1
      %p119 = scmp.ne.s32.totalorder %s114, %s116
      %p120 = scmp.eq.s32.totalorder %s17, 0
      %p121 = por %p119, %p120
      %p122 = scmp.ne.s32.totalorder %s114, %s116
      %p123 = scmp.eq.s32.totalorder %s22, 1
      %p124 = por %p122, %p123
      %p125 = scmp.ne.s32.totalorder %s116, %s117
      %p126 = scmp.eq.s32.totalorder %s22, 0
      %p127 = por %p125, %p126
      %p128 = scmp.ne.s32.totalorder %s116, %s117
      %p129 = scmp.eq.s32.totalorder %s23, 1
      %p130 = por %p128, %p129
      %p132 = scmp.ne.s32.totalorder %s117, %s131
      %p133 = scmp.eq.s32.totalorder %s23, 0
      %p134 = por %p132, %p133
      %s136 = sadd.s32 %s135, 1
      %p139 = scmp.eq.s32.totalorder %s17, 1
      %p140 = scmp.ne.s32.totalorder %s135, %s137
      %p141 = scmp.eq.s32.totalorder %s17, 0
      %p142 = por %p140, %p141
      %p143 = scmp.ne.s32.totalorder %s135, %s137
      %p144 = scmp.eq.s32.totalorder %s22, 1
      %p145 = por %p143, %p144
      %p146 = scmp.ne.s32.totalorder %s137, %s138
      %p147 = scmp.eq.s32.totalorder %s22, 0
      %p148 = por %p146, %p147
      %p149 = scmp.ne.s32.totalorder %s137, %s138
      %p150 = scmp.eq.s32.totalorder %s23, 1
      %p151 = por %p149, %p150
      %p153 = scmp.ne.s32.totalorder %s138, %s152
      %p154 = scmp.eq.s32.totalorder %s23, 0
      %p155 = por %p153, %p154
      %s157 = sadd.s32 %s156, 1
      %p160 = scmp.eq.s32.totalorder %s17, 1
      %p161 = scmp.ne.s32.totalorder %s156, %s158
      %p162 = scmp.eq.s32.totalorder %s17, 0
      %p163 = por %p161, %p162
      %p164 = scmp.ne.s32.totalorder %s156, %s158
      %p165 = scmp.eq.s32.totalorder %s22, 1
      %p166 = por %p164, %p165
      %p167 = scmp.ne.s32.totalorder %s158, %s159
      %p168 = scmp.eq.s32.totalorder %s22, 0
      %p169 = por %p167, %p168
      %p170 = scmp.ne.s32.totalorder %s158, %s159
      %p171 = scmp.eq.s32.totalorder %s23, 1
      %p172 = por %p170, %p171
      %p174 = scmp.ne.s32.totalorder %s159, %s173
      %p175 = scmp.eq.s32.totalorder %s23, 0
      %p176 = por %p174, %p175
      %s177 = ssub.s32 %s17, %s24
      %p178 = scmp.eq.s32.totalorder %s177, 0
      %s180 = sadd.s32 %s179, 1
      %s181 = scalar_select %p178, %s179, %s180
      %p184 = pneg %p178
      %p185 = scmp.eq.s32.totalorder %s17, 1
      %p186 = por %p184, %p185
      %p187 = scmp.ne.s32.totalorder %s179, %s182
      %p188 = scmp.eq.s32.totalorder %s17, 0
      %p189 = por %p187, %p188
      %p190 = scmp.ne.s32.totalorder %s179, %s182
      %p191 = scmp.eq.s32.totalorder %s22, 1
      %p192 = por %p190, %p191
      %p193 = scmp.ne.s32.totalorder %s182, %s183
      %p194 = scmp.eq.s32.totalorder %s22, 0
      %p195 = por %p193, %p194
      %p196 = scmp.ne.s32.totalorder %s182, %s183
      %p197 = scmp.eq.s32.totalorder %s23, 1
      %p198 = por %p196, %p197
      %p200 = scmp.ne.s32.totalorder %s183, %s199
      %p201 = scmp.eq.s32.totalorder %s23, 0
      %p202 = por %p200, %p201
      %p203 = scmp.le.s32.totalorder 1, %s17
      %p204 = scmp.lt.s32.totalorder %s17, 3
      %p205 = pnand %p203, %p204
      %p206 = pneg %p205
      // Predicated region
      $region9: #{tpu_custom_call.1} parent=5 // pred_check
        _
      $region10: #{tpu_custom_call.1} parent=5 // pred_check_branch
        %208 = sbr.rel (%p205) target = $region12
      $region11: #{tpu_custom_call.1} parent=5 // pred_region
        %s209 = ssub.s32 %s17, 1
        // Predicated region
        $region13: #{tpu_custom_call.1} parent=11 // pred_check
          %p210 = pneg %p64
        $region14: #{tpu_custom_call.1} parent=11 // pred_check_branch
          %212 = sbr.rel (%p210) target = $region16
        $region15: #{tpu_custom_call.1} parent=11 // pred_region
          _
        $region16: #{tpu_custom_call.1} parent=11 // pred_fallthru
          _
        // Predicated region
        $region17: #{tpu_custom_call.1} parent=11 // pred_check
          %p213 = pneg %p85
        $region18: #{tpu_custom_call.1} parent=11 // pred_check_branch
          %215 = sbr.rel (%p213) target = $region20
        $region19: #{tpu_custom_call.1} parent=11 // pred_region
          _
        $region20: #{tpu_custom_call.1} parent=11 // pred_fallthru
          _
        // Predicated region
        $region21: #{tpu_custom_call.1} parent=11 // pred_check
          %p216 = pneg %p106
        $region22: #{tpu_custom_call.1} parent=11 // pred_check_branch
          %218 = sbr.rel (%p216) target = $region24
        $region23: #{tpu_custom_call.1} parent=11 // pred_region
          %220 = vsyncadd [#allocation3], 0
          %s221 = sshll.u32 %s3, 4
          %s222 = int_to_ptr.hbm [resolvable:$true] %s221
          %s223 = sshll.u32 [#allocation2], 4
          %s224 = int_to_ptr.vmem [resolvable:$true] %s223
          %229 = dma.hbm_to_vmem [thread:$0]  %s222, 4096, %s224, [#allocation3], 128, 128, 8
        $region24: #{tpu_custom_call.1} parent=11 // pred_fallthru
          _
        // Predicated region
        $region25: #{tpu_custom_call.1} parent=11 // pred_check
          %p230 = pneg %p127
        $region26: #{tpu_custom_call.1} parent=11 // pred_check_branch
          %232 = sbr.rel (%p230) target = $region28
        $region27: #{tpu_custom_call.1} parent=11 // pred_region
          _
        $region28: #{tpu_custom_call.1} parent=11 // pred_fallthru
          _
        // Predicated region
        $region29: #{tpu_custom_call.1} parent=11 // pred_check
          %p233 = pneg %p148
        $region30: #{tpu_custom_call.1} parent=11 // pred_check_branch
          %235 = sbr.rel (%p233) target = $region32
        $region31: #{tpu_custom_call.1} parent=11 // pred_region
          _
        $region32: #{tpu_custom_call.1} parent=11 // pred_fallthru
          _
        // Predicated region
        $region33: #{tpu_custom_call.1} parent=11 // pred_check
          %p236 = pneg %p169
        $region34: #{tpu_custom_call.1} parent=11 // pred_check_branch
          %238 = sbr.rel (%p236) target = $region36
        $region35: #{tpu_custom_call.1} parent=11 // pred_region
          _
        $region36: #{tpu_custom_call.1} parent=11 // pred_fallthru
          _
      $region12: #{tpu_custom_call.1} parent=5 // pred_fallthru
        _
      %p239 = scmp.lt.s32.totalorder %s17, 2
      // Predicated region
      $region37: #{tpu_custom_call.1} parent=5 // pred_check
        %p240 = pneg %p239
      $region38: #{tpu_custom_call.1} parent=5 // pred_check_branch
        %242 = sbr.rel (%p240) target = $region40
      $region39: #{tpu_custom_call.1} parent=5 // pred_region
        // Predicated region
        $region41: #{tpu_custom_call.1} parent=39 // pred_check
          %p243 = pneg %p37
        $region42: #{tpu_custom_call.1} parent=39 // pred_check_branch
          %245 = sbr.rel (%p243) target = $region44
        $region43: #{tpu_custom_call.1} parent=39 // pred_region
          %s246 = smul.u32 4, %s17
          %p247 = scmp.lt.s32.totalorder %s246, 7
          %s248 = scalar_select %p247, %s246, 7
          %s249 = smul.addr %s248, 4
          %s250 = scalar_lea.vmem %s0, %s249
          %s251 = smul.u32 4, %s17
        $region44: #{tpu_custom_call.1} parent=39 // pred_fallthru
          _
      $region40: #{tpu_custom_call.1} parent=5 // pred_fallthru
        _
      %p252 = scmp.le.s32.totalorder 1, %s17
      %p253 = scmp.lt.s32.totalorder %s17, 3
      %p254 = pnand %p252, %p253
      %p255 = pneg %p254
      // Predicated region
      $region45: #{tpu_custom_call.1} parent=5 // pred_check
        _
      $region46: #{tpu_custom_call.1} parent=5 // pred_check_branch
        %257 = sbr.rel (%p254) target = $region48
      $region47: #{tpu_custom_call.1} parent=5 // pred_region
        %s258 = ssub.s32 %s17, 1
        // Predicated region
        $region49: #{tpu_custom_call.1} parent=47 // pred_check
          %p259 = pneg %p106
        $region50: #{tpu_custom_call.1} parent=47 // pred_check_branch
          %261 = sbr.rel (%p259) target = $region52
        $region51: #{tpu_custom_call.1} parent=47 // pred_region
          %263 = dma.done [#allocation3], 4096
        $region52: #{tpu_custom_call.1} parent=47 // pred_fallthru
          _
        %s264 = smul.u32 4, %s22
        %p265 = scmp.lt.s32.totalorder %s264, 7
        %s266 = scalar_select %p265, %s264, 7
        %s267 = smul.addr %s266, 4
        %s268 = scalar_lea.vmem %s0, %s267
        %p269 = pneg %p43
        %p270 = pneg %p40
        %p271 = pneg %p64
        %p272 = pneg %p61
        %p273 = pneg %p85
        %p274 = pneg %p82
        %p275 = pneg %p106
        %p276 = pneg %p103
        %p277 = pneg %p127
        %p278 = pneg %p124
        %p279 = pneg %p148
        %p280 = pneg %p145
        %p281 = pneg %p169
        %p282 = pneg %p166
        %p283 = pneg %p195
        %p284 = pneg %p192
        %s285 = sand.u32 %s182, 1
        %s286 = scalar_lea.sflag [#allocation4], %s285
        %s287 = sand.u32 %s182, 1
        %s288 = smul.addr %s287, 32
        %s289 = scalar_lea.vmem [#allocation5], %s288
        %s290 = smul.u32 4, %s22
        %p291 = scmp.lt.s32.totalorder %s290, 7
        %s292 = scalar_select %p291, %s290, 7
        %s293 = smul.addr %s292, 4
        %s294 = scalar_lea.vmem %s0, %s293
        %s295 = smul.u32 4, %s22
        %s296 = smul.u32 4, %s22
        %v298 = vld [vmem:[%s294] sm:$0xf]
        %v299 = vld [vmem:[%s294 + $0x4] sm:$0xf]
        %v300 = vld [vmem:[%s294 + $0x8] sm:$0xf]
        %v301 = vld [vmem:[%s294 + $0xc] sm:$0xf]
        %v302 = vld [vmem:[%s1] sm:$0xff]
        %v303 = vld [vmem:[%s1 + $0x8] sm:$0xff]
        %v304 = vld [vmem:[%s1 + $0x10] sm:$0xff]
        %v305 = vld [vmem:[%s1 + $0x18] sm:$0xff]
        %v306 = vld [vmem:[%s1 + $0x20] sm:$0xff]
        %v307 = vld [vmem:[%s1 + $0x28] sm:$0xff]
        %v308 = vld [vmem:[%s1 + $0x30] sm:$0xff]
        %v309 = vld [vmem:[%s1 + $0x38] sm:$0xff]
        %v310 = vld [vmem:[%s2] sm:$0x3]
        %v312 = vperm.slane %v310, 0
        %v313 = vperm.slane %v310, 1
        %v320 = vunpack.c.l.b16 %v298
        %v321 = vunpack.c.l.b16 %v299
        %v322 = vunpack.c.l.b16 %v300
        %v323 = vunpack.c.l.b16 %v301
        %v324 = vpack.c.b16 %v321, %v320
        %v325 = vpack.c.b16 %v323, %v322
        %v334 = vunpack.c.l.b16 %v302
        %v335 = vunpack.c.h.b16 %v302
        %v336 = vunpack.c.l.b16 %v303
        %v337 = vunpack.c.h.b16 %v303
        %v338 = vunpack.c.l.b16 %v304
        %v339 = vunpack.c.h.b16 %v304
        %v340 = vunpack.c.l.b16 %v305
        %v341 = vunpack.c.h.b16 %v305
        %v342 = vunpack.c.l.b16 %v306
        %v343 = vunpack.c.h.b16 %v306
        %v344 = vunpack.c.l.b16 %v307
        %v345 = vunpack.c.h.b16 %v307
        %v346 = vunpack.c.l.b16 %v308
        %v347 = vunpack.c.h.b16 %v308
        %v348 = vunpack.c.l.b16 %v309
        %v349 = vunpack.c.h.b16 %v309
        %v350 = vpack.c.b16 %v336, %v334
        %v351 = vpack.c.b16 %v337, %v335
        %v352 = vpack.c.b16 %v340, %v338
        %v353 = vpack.c.b16 %v341, %v339
        %v354 = vpack.c.b16 %v344, %v342
        %v355 = vpack.c.b16 %v345, %v343
        %v356 = vpack.c.b16 %v348, %v346
        %v357 = vpack.c.b16 %v349, %v347
        %vm366 = vcmask 523264
        %v368 = vsel %vm366, %v324, 0
        %v371 = vsel %vm366, %v325, 0
        %373 = vmatpush.bf16.msra.mxu0 0
        %374 = vmatpush.bf16.msra.mxu0 0
        %375 = vmatpush.bf16.msra.mxu0 0
        %376 = vmatpush.bf16.msra.mxu0 0
        %377 = vmatpush.bf16.msra.mxu0 %v356
        %378 = vmatpush.bf16.msra.mxu0 %v354
        %379 = vmatpush.bf16.msra.mxu0 %v352
        %380 = vmatpush.bf16.msra.mxu0 %v350
        %381 = vmatmul.bf16.gmra.mxu0 %v368
        %v382 = vpop.f32.mrf.mxu0
        %v383 = vadd.f32 %v312, %v382
        %v384 = vpop.f32.mrf.mxu0
        %v385 = vadd.f32 %v312, %v384
        %386 = vmatmul.bf16.gmra.mxu0 %v371
        %v387 = vpop.f32.mrf.mxu0
        %v388 = vadd.f32 %v312, %v387
        %v389 = vpop.f32.mrf.mxu0
        %v390 = vadd.f32 %v312, %v389
        %391 = vdwg.mxu0
        %392 = vmatpush.bf16.msra.mxu0 0
        %393 = vmatpush.bf16.msra.mxu0 0
        %394 = vmatpush.bf16.msra.mxu0 0
        %395 = vmatpush.bf16.msra.mxu0 0
        %396 = vmatpush.bf16.msra.mxu0 %v357
        %397 = vmatpush.bf16.msra.mxu0 %v355
        %398 = vmatpush.bf16.msra.mxu0 %v353
        %399 = vmatpush.bf16.msra.mxu0 %v351
        %400 = vmatmul.bf16.gmra.mxu0 %v368
        %v401 = vpop.f32.mrf.mxu0
        %v402 = vadd.f32 %v313, %v401
        %v403 = vpop.f32.mrf.mxu0
        %v404 = vadd.f32 %v313, %v403
        %405 = vmatmul.bf16.gmra.mxu0 %v371
        %v406 = vpop.f32.mrf.mxu0
        %v407 = vadd.f32 %v313, %v406
        %v408 = vpop.f32.mrf.mxu0
        %v409 = vadd.f32 %v313, %v408
        %410 = vdwg.mxu0
        %v411 = vmul.f32 %v383, %v383
        %v412 = vmul.f32 %v402, %v402
        %v413 = vmul.f32 %v385, %v385
        %v414 = vmul.f32 %v404, %v404
        %v415 = vmul.f32 %v388, %v388
        %v416 = vmul.f32 %v407, %v407
        %v417 = vmul.f32 %v390, %v390
        %v418 = vmul.f32 %v409, %v409
        %v419 = vmul.f32 %v383, %v411
        %v420 = vmul.f32 %v402, %v412
        %v421 = vmul.f32 %v385, %v413
        %v422 = vmul.f32 %v404, %v414
        %v423 = vmul.f32 %v388, %v415
        %v424 = vmul.f32 %v407, %v416
        %v425 = vmul.f32 %v390, %v417
        %v426 = vmul.f32 %v409, %v418
        %v427 = vmul.f32 %v419, 0.044715
        %v428 = vmul.f32 %v420, 0.044715
        %v429 = vmul.f32 %v421, 0.044715
        %v430 = vmul.f32 %v422, 0.044715
        %v431 = vmul.f32 %v423, 0.044715
        %v432 = vmul.f32 %v424, 0.044715
        %v433 = vmul.f32 %v425, 0.044715
        %v434 = vmul.f32 %v426, 0.044715
        %v435 = vadd.f32 %v383, %v427
        %v436 = vadd.f32 %v402, %v428
        %v437 = vadd.f32 %v385, %v429
        %v438 = vadd.f32 %v404, %v430
        %v439 = vadd.f32 %v388, %v431
        %v440 = vadd.f32 %v407, %v432
        %v441 = vadd.f32 %v390, %v433
        %v442 = vadd.f32 %v409, %v434
        %v443 = vmul.f32 %v435, 0.7978846
        %v444 = vmul.f32 %v436, 0.7978846
        %v445 = vmul.f32 %v437, 0.7978846
        %v446 = vmul.f32 %v438, 0.7978846
        %v447 = vmul.f32 %v439, 0.7978846
        %v448 = vmul.f32 %v440, 0.7978846
        %v449 = vmul.f32 %v441, 0.7978846
        %v450 = vmul.f32 %v442, 0.7978846
        %v451 = vtanh.pop %v443
        %v452 = vtanh.pop %v444
        %v453 = vtanh.pop %v445
        %v454 = vtanh.pop %v446
        %v455 = vtanh.pop %v447
        %v456 = vtanh.pop %v448
        %v457 = vtanh.pop %v449
        %v458 = vtanh.pop %v450
        %v459 = vadd.f32 %v451, 1.0
        %v460 = vadd.f32 %v452, 1.0
        %v461 = vadd.f32 %v453, 1.0
        %v462 = vadd.f32 %v454, 1.0
        %v463 = vadd.f32 %v455, 1.0
        %v464 = vadd.f32 %v456, 1.0
        %v465 = vadd.f32 %v457, 1.0
        %v466 = vadd.f32 %v458, 1.0
        %v467 = vmul.f32 %v459, 0.5
        %v468 = vmul.f32 %v460, 0.5
        %v469 = vmul.f32 %v461, 0.5
        %v470 = vmul.f32 %v462, 0.5
        %v471 = vmul.f32 %v463, 0.5
        %v472 = vmul.f32 %v464, 0.5
        %v473 = vmul.f32 %v465, 0.5
        %v474 = vmul.f32 %v466, 0.5
        %v475 = vmul.f32 %v383, %v467
        %v476 = vmul.f32 %v402, %v468
        %v477 = vmul.f32 %v385, %v469
        %v478 = vmul.f32 %v404, %v470
        %v479 = vmul.f32 %v388, %v471
        %v480 = vmul.f32 %v407, %v472
        %v481 = vmul.f32 %v390, %v473
        %v482 = vmul.f32 %v409, %v474
        %v483 = vpack.c.bf16 %v477, %v475
        %v484 = vpack.c.bf16 %v478, %v476
        %v485 = vpack.c.bf16 %v481, %v479
        %v486 = vpack.c.bf16 %v482, %v480
        %v487 = vld [vmem:[#allocation2] sm:$0xff]
        %v488 = vld [vmem:[#allocation2 + $0x8] sm:$0xff]
        %v489 = vld [vmem:[#allocation2 + $0x10] sm:$0xff]
        %v490 = vld [vmem:[#allocation2 + $0x18] sm:$0xff]
        %v491 = vld [vmem:[#allocation2 + $0x20] sm:$0xff]
        %v492 = vld [vmem:[#allocation2 + $0x28] sm:$0xff]
        %v493 = vld [vmem:[#allocation2 + $0x30] sm:$0xff]
        %v494 = vld [vmem:[#allocation2 + $0x38] sm:$0xff]
        %v495 = vld [vmem:[#allocation2 + $0x40] sm:$0xff]
        %v496 = vld [vmem:[#allocation2 + $0x48] sm:$0xff]
        %v497 = vld [vmem:[#allocation2 + $0x50] sm:$0xff]
        %v498 = vld [vmem:[#allocation2 + $0x58] sm:$0xff]
        %v499 = vld [vmem:[#allocation2 + $0x60] sm:$0xff]
        %v500 = vld [vmem:[#allocation2 + $0x68] sm:$0xff]
        %v501 = vld [vmem:[#allocation2 + $0x70] sm:$0xff]
        %v502 = vld [vmem:[#allocation2 + $0x78] sm:$0xff]
        %v503 = vld [vmem:[#allocation2 + $0x80] sm:$0xff]
        %v504 = vld [vmem:[#allocation2 + $0x88] sm:$0xff]
        %v505 = vld [vmem:[#allocation2 + $0x90] sm:$0xff]
        %v506 = vld [vmem:[#allocation2 + $0x98] sm:$0xff]
        %v507 = vld [vmem:[#allocation2 + $0xa0] sm:$0xff]
        %v508 = vld [vmem:[#allocation2 + $0xa8] sm:$0xff]
        %v509 = vld [vmem:[#allocation2 + $0xb0] sm:$0xff]
        %v510 = vld [vmem:[#allocation2 + $0xb8] sm:$0xff]
        %v511 = vld [vmem:[#allocation2 + $0xc0] sm:$0xff]
        %v512 = vld [vmem:[#allocation2 + $0xc8] sm:$0xff]
        %v513 = vld [vmem:[#allocation2 + $0xd0] sm:$0xff]
        %v514 = vld [vmem:[#allocation2 + $0xd8] sm:$0xff]
        %v515 = vld [vmem:[#allocation2 + $0xe0] sm:$0xff]
        %v516 = vld [vmem:[#allocation2 + $0xe8] sm:$0xff]
        %v517 = vld [vmem:[#allocation2 + $0xf0] sm:$0xff]
        %v518 = vld [vmem:[#allocation2 + $0xf8] sm:$0xff]
        %v519 = vld [vmem:[%s4] sm:$0x3]
        %v521 = vperm.slane %v519, 0
        %v522 = vperm.slane %v519, 1
        %v557 = vunpack.c.l.b16 %v487
        %v558 = vunpack.c.h.b16 %v487
        %v559 = vunpack.c.l.b16 %v488
        %v560 = vunpack.c.h.b16 %v488
        %v561 = vunpack.c.l.b16 %v489
        %v562 = vunpack.c.h.b16 %v489
        %v563 = vunpack.c.l.b16 %v490
        %v564 = vunpack.c.h.b16 %v490
        %v565 = vunpack.c.l.b16 %v491
        %v566 = vunpack.c.h.b16 %v491
        %v567 = vunpack.c.l.b16 %v492
        %v568 = vunpack.c.h.b16 %v492
        %v569 = vunpack.c.l.b16 %v493
        %v570 = vunpack.c.h.b16 %v493
        %v571 = vunpack.c.l.b16 %v494
        %v572 = vunpack.c.h.b16 %v494
        %v573 = vunpack.c.l.b16 %v495
        %v574 = vunpack.c.h.b16 %v495
        %v575 = vunpack.c.l.b16 %v496
        %v576 = vunpack.c.h.b16 %v496
        %v577 = vunpack.c.l.b16 %v497
        %v578 = vunpack.c.h.b16 %v497
        %v579 = vunpack.c.l.b16 %v498
        %v580 = vunpack.c.h.b16 %v498
        %v581 = vunpack.c.l.b16 %v499
        %v582 = vunpack.c.h.b16 %v499
        %v583 = vunpack.c.l.b16 %v500
        %v584 = vunpack.c.h.b16 %v500
        %v585 = vunpack.c.l.b16 %v501
        %v586 = vunpack.c.h.b16 %v501
        %v587 = vunpack.c.l.b16 %v502
        %v588 = vunpack.c.h.b16 %v502
        %v589 = vunpack.c.l.b16 %v503
        %v590 = vunpack.c.h.b16 %v503
        %v591 = vunpack.c.l.b16 %v504
        %v592 = vunpack.c.h.b16 %v504
        %v593 = vunpack.c.l.b16 %v505
        %v594 = vunpack.c.h.b16 %v505
        %v595 = vunpack.c.l.b16 %v506
        %v596 = vunpack.c.h.b16 %v506
        %v597 = vunpack.c.l.b16 %v507
        %v598 = vunpack.c.h.b16 %v507
        %v599 = vunpack.c.l.b16 %v508
        %v600 = vunpack.c.h.b16 %v508
        %v601 = vunpack.c.l.b16 %v509
        %v602 = vunpack.c.h.b16 %v509
        %v603 = vunpack.c.l.b16 %v510
        %v604 = vunpack.c.h.b16 %v510
        %v605 = vunpack.c.l.b16 %v511
        %v606 = vunpack.c.h.b16 %v511
        %v607 = vunpack.c.l.b16 %v512
        %v608 = vunpack.c.h.b16 %v512
        %v609 = vunpack.c.l.b16 %v513
        %v610 = vunpack.c.h.b16 %v513
        %v611 = vunpack.c.l.b16 %v514
        %v612 = vunpack.c.h.b16 %v514
        %v613 = vunpack.c.l.b16 %v515
        %v614 = vunpack.c.h.b16 %v515
        %v615 = vunpack.c.l.b16 %v516
        %v616 = vunpack.c.h.b16 %v516
        %v617 = vunpack.c.l.b16 %v517
        %v618 = vunpack.c.h.b16 %v517
        %v619 = vunpack.c.l.b16 %v518
        %v620 = vunpack.c.h.b16 %v518
        %v621 = vpack.c.b16 %v559, %v557
        %v622 = vpack.c.b16 %v560, %v558
        %v623 = vpack.c.b16 %v563, %v561
        %v624 = vpack.c.b16 %v564, %v562
        %v625 = vpack.c.b16 %v567, %v565
        %v626 = vpack.c.b16 %v568, %v566
        %v627 = vpack.c.b16 %v571, %v569
        %v628 = vpack.c.b16 %v572, %v570
        %v629 = vpack.c.b16 %v575, %v573
        %v630 = vpack.c.b16 %v576, %v574
        %v631 = vpack.c.b16 %v579, %v577
        %v632 = vpack.c.b16 %v580, %v578
        %v633 = vpack.c.b16 %v583, %v581
        %v634 = vpack.c.b16 %v584, %v582
        %v635 = vpack.c.b16 %v587, %v585
        %v636 = vpack.c.b16 %v588, %v586
        %v637 = vpack.c.b16 %v591, %v589
        %v638 = vpack.c.b16 %v592, %v590
        %v639 = vpack.c.b16 %v595, %v593
        %v640 = vpack.c.b16 %v596, %v594
        %v641 = vpack.c.b16 %v599, %v597
        %v642 = vpack.c.b16 %v600, %v598
        %v643 = vpack.c.b16 %v603, %v601
        %v644 = vpack.c.b16 %v604, %v602
        %v645 = vpack.c.b16 %v607, %v605
        %v646 = vpack.c.b16 %v608, %v606
        %v647 = vpack.c.b16 %v611, %v609
        %v648 = vpack.c.b16 %v612, %v610
        %v649 = vpack.c.b16 %v615, %v613
        %v650 = vpack.c.b16 %v616, %v614
        %v651 = vpack.c.b16 %v619, %v617
        %v652 = vpack.c.b16 %v620, %v618
        %685 = vmatpush.bf16.msra.mxu0 %v635
        %686 = vmatpush.bf16.msra.mxu0 %v633
        %687 = vmatpush.bf16.msra.mxu0 %v631
        %688 = vmatpush.bf16.msra.mxu0 %v629
        %689 = vmatpush.bf16.msra.mxu0 %v627
        %690 = vmatpush.bf16.msra.mxu0 %v625
        %691 = vmatpush.bf16.msra.mxu0 %v623
        %692 = vmatpush.bf16.msra.mxu0 %v621
        %693 = vmatmul.bf16.gmra.mxu0 %v483
        %v694 = vpop.f32.mrf.mxu0
        %v695 = vadd.f32 %v521, %v694
        %v696 = vpop.f32.mrf.mxu0
        %v697 = vadd.f32 %v521, %v696
        %698 = vmatmul.bf16.gmra.mxu0 %v485
        %v699 = vpop.f32.mrf.mxu0
        %v700 = vadd.f32 %v521, %v699
        %v701 = vpop.f32.mrf.mxu0
        %v702 = vadd.f32 %v521, %v701
        %703 = vdwg.mxu0
        %704 = vmatpush.bf16.msra.mxu0 %v651
        %705 = vmatpush.bf16.msra.mxu0 %v649
        %706 = vmatpush.bf16.msra.mxu0 %v647
        %707 = vmatpush.bf16.msra.mxu0 %v645
        %708 = vmatpush.bf16.msra.mxu0 %v643
        %709 = vmatpush.bf16.msra.mxu0 %v641
        %710 = vmatpush.bf16.msra.mxu0 %v639
        %711 = vmatpush.bf16.msra.mxu0 %v637
        %712 = vmatmul.bf16.gmra.mxu0 %v484
        %v713 = vpop.f32.mrf.mxu0
        %v714 = vadd.f32 %v695, %v713
        %v715 = vpop.f32.mrf.mxu0
        %v716 = vadd.f32 %v697, %v715
        %717 = vmatmul.bf16.gmra.mxu0 %v486
        %v718 = vpop.f32.mrf.mxu0
        %v719 = vadd.f32 %v700, %v718
        %v720 = vpop.f32.mrf.mxu0
        %v721 = vadd.f32 %v702, %v720
        %722 = vdwg.mxu0
        %723 = vmatpush.bf16.msra.mxu0 %v636
        %724 = vmatpush.bf16.msra.mxu0 %v634
        %725 = vmatpush.bf16.msra.mxu0 %v632
        %726 = vmatpush.bf16.msra.mxu0 %v630
        %727 = vmatpush.bf16.msra.mxu0 %v628
        %728 = vmatpush.bf16.msra.mxu0 %v626
        %729 = vmatpush.bf16.msra.mxu0 %v624
        %730 = vmatpush.bf16.msra.mxu0 %v622
        %731 = vmatmul.bf16.gmra.mxu0 %v483
        %v732 = vpop.f32.mrf.mxu0
        %v733 = vadd.f32 %v522, %v732
        %v734 = vpop.f32.mrf.mxu0
        %v735 = vadd.f32 %v522, %v734
        %736 = vmatmul.bf16.gmra.mxu0 %v485
        %v737 = vpop.f32.mrf.mxu0
        %v738 = vadd.f32 %v522, %v737
        %v739 = vpop.f32.mrf.mxu0
        %v740 = vadd.f32 %v522, %v739
        %741 = vdwg.mxu0
        %742 = vmatpush.bf16.msra.mxu0 %v652
        %743 = vmatpush.bf16.msra.mxu0 %v650
        %744 = vmatpush.bf16.msra.mxu0 %v648
        %745 = vmatpush.bf16.msra.mxu0 %v646
        %746 = vmatpush.bf16.msra.mxu0 %v644
        %747 = vmatpush.bf16.msra.mxu0 %v642
        %748 = vmatpush.bf16.msra.mxu0 %v640
        %749 = vmatpush.bf16.msra.mxu0 %v638
        %750 = vmatmul.bf16.gmra.mxu0 %v484
        %v751 = vpop.f32.mrf.mxu0
        %v752 = vadd.f32 %v733, %v751
        %v753 = vpop.f32.mrf.mxu0
        %v754 = vadd.f32 %v735, %v753
        %755 = vmatmul.bf16.gmra.mxu0 %v486
        %v756 = vpop.f32.mrf.mxu0
        %v757 = vadd.f32 %v738, %v756
        %v758 = vpop.f32.mrf.mxu0
        %v759 = vadd.f32 %v740, %v758
        %760 = vdwg.mxu0
        %v761 = vmul.f32 %v714, %v714
        %v762 = vmul.f32 %v752, %v752
        %v763 = vmul.f32 %v716, %v716
        %v764 = vmul.f32 %v754, %v754
        %v765 = vmul.f32 %v719, %v719
        %v766 = vmul.f32 %v757, %v757
        %v767 = vmul.f32 %v721, %v721
        %v768 = vmul.f32 %v759, %v759
        %v769 = vmul.f32 %v714, %v761
        %v770 = vmul.f32 %v752, %v762
        %v771 = vmul.f32 %v716, %v763
        %v772 = vmul.f32 %v754, %v764
        %v773 = vmul.f32 %v719, %v765
        %v774 = vmul.f32 %v757, %v766
        %v775 = vmul.f32 %v721, %v767
        %v776 = vmul.f32 %v759, %v768
        %v777 = vmul.f32 %v769, 0.044715
        %v778 = vmul.f32 %v770, 0.044715
        %v779 = vmul.f32 %v771, 0.044715
        %v780 = vmul.f32 %v772, 0.044715
        %v781 = vmul.f32 %v773, 0.044715
        %v782 = vmul.f32 %v774, 0.044715
        %v783 = vmul.f32 %v775, 0.044715
        %v784 = vmul.f32 %v776, 0.044715
        %v785 = vadd.f32 %v714, %v777
        %v786 = vadd.f32 %v752, %v778
        %v787 = vadd.f32 %v716, %v779
        %v788 = vadd.f32 %v754, %v780
        %v789 = vadd.f32 %v719, %v781
        %v790 = vadd.f32 %v757, %v782
        %v791 = vadd.f32 %v721, %v783
        %v792 = vadd.f32 %v759, %v784
        %v793 = vmul.f32 %v785, 0.7978846
        %v794 = vmul.f32 %v786, 0.7978846
        %v795 = vmul.f32 %v787, 0.7978846
        %v796 = vmul.f32 %v788, 0.7978846
        %v797 = vmul.f32 %v789, 0.7978846
        %v798 = vmul.f32 %v790, 0.7978846
        %v799 = vmul.f32 %v791, 0.7978846
        %v800 = vmul.f32 %v792, 0.7978846
        %v801 = vtanh.pop %v793
        %v802 = vtanh.pop %v794
        %v803 = vtanh.pop %v795
        %v804 = vtanh.pop %v796
        %v805 = vtanh.pop %v797
        %v806 = vtanh.pop %v798
        %v807 = vtanh.pop %v799
        %v808 = vtanh.pop %v800
        %v809 = vadd.f32 %v801, 1.0
        %v810 = vadd.f32 %v802, 1.0
        %v811 = vadd.f32 %v803, 1.0
        %v812 = vadd.f32 %v804, 1.0
        %v813 = vadd.f32 %v805, 1.0
        %v814 = vadd.f32 %v806, 1.0
        %v815 = vadd.f32 %v807, 1.0
        %v816 = vadd.f32 %v808, 1.0
        %v817 = vmul.f32 %v809, 0.5
        %v818 = vmul.f32 %v810, 0.5
        %v819 = vmul.f32 %v811, 0.5
        %v820 = vmul.f32 %v812, 0.5
        %v821 = vmul.f32 %v813, 0.5
        %v822 = vmul.f32 %v814, 0.5
        %v823 = vmul.f32 %v815, 0.5
        %v824 = vmul.f32 %v816, 0.5
        %v825 = vmul.f32 %v714, %v817
        %v826 = vmul.f32 %v752, %v818
        %v827 = vmul.f32 %v716, %v819
        %v828 = vmul.f32 %v754, %v820
        %v829 = vmul.f32 %v719, %v821
        %v830 = vmul.f32 %v757, %v822
        %v831 = vmul.f32 %v721, %v823
        %v832 = vmul.f32 %v759, %v824
        %v833 = vpack.c.bf16 %v827, %v825
        %v834 = vpack.c.bf16 %v828, %v826
        %v835 = vpack.c.bf16 %v831, %v829
        %v836 = vpack.c.bf16 %v832, %v830
        %v837 = vld [vmem:[%s5] sm:$0xf]
        %v838 = vld [vmem:[%s5 + $0x4] sm:$0xf]
        %v839 = vld [vmem:[%s5 + $0x8] sm:$0xf]
        %v840 = vld [vmem:[%s5 + $0xc] sm:$0xf]
        %v841 = vld [vmem:[%s5 + $0x10] sm:$0xf]
        %v842 = vld [vmem:[%s5 + $0x14] sm:$0xf]
        %v843 = vld [vmem:[%s5 + $0x18] sm:$0xf]
        %v844 = vld [vmem:[%s5 + $0x1c] sm:$0xf]
        %v845 = vld [vmem:[%s5 + $0x20] sm:$0xf]
        %v846 = vld [vmem:[%s5 + $0x24] sm:$0xf]
        %v847 = vld [vmem:[%s5 + $0x28] sm:$0xf]
        %v848 = vld [vmem:[%s5 + $0x2c] sm:$0xf]
        %v849 = vld [vmem:[%s5 + $0x30] sm:$0xf]
        %v850 = vld [vmem:[%s5 + $0x34] sm:$0xf]
        %v851 = vld [vmem:[%s5 + $0x38] sm:$0xf]
        %v852 = vld [vmem:[%s5 + $0x3c] sm:$0xf]
        %v853 = vld [vmem:[%s5 + $0x40] sm:$0xf]
        %v854 = vld [vmem:[%s5 + $0x44] sm:$0xf]
        %v855 = vld [vmem:[%s5 + $0x48] sm:$0xf]
        %v856 = vld [vmem:[%s5 + $0x4c] sm:$0xf]
        %v857 = vld [vmem:[%s5 + $0x50] sm:$0xf]
        %v858 = vld [vmem:[%s5 + $0x54] sm:$0xf]
        %v859 = vld [vmem:[%s5 + $0x58] sm:$0xf]
        %v860 = vld [vmem:[%s5 + $0x5c] sm:$0xf]
        %v861 = vld [vmem:[%s5 + $0x60] sm:$0xf]
        %v862 = vld [vmem:[%s5 + $0x64] sm:$0xf]
        %v863 = vld [vmem:[%s5 + $0x68] sm:$0xf]
        %v864 = vld [vmem:[%s5 + $0x6c] sm:$0xf]
        %v865 = vld [vmem:[%s5 + $0x70] sm:$0xf]
        %v866 = vld [vmem:[%s5 + $0x74] sm:$0xf]
        %v867 = vld [vmem:[%s5 + $0x78] sm:$0xf]
        %v868 = vld [vmem:[%s5 + $0x7c] sm:$0xf]
        %v869 = vld [vmem:[%s6] sm:$0x1]
        %v871 = vperm.slane %v869, 0
        %v905 = vunpack.c.l.b16 %v837
        %v906 = vunpack.c.l.b16 %v838
        %v907 = vunpack.c.l.b16 %v839
        %v908 = vunpack.c.l.b16 %v840
        %v909 = vunpack.c.l.b16 %v841
        %v910 = vunpack.c.l.b16 %v842
        %v911 = vunpack.c.l.b16 %v843
        %v912 = vunpack.c.l.b16 %v844
        %v913 = vunpack.c.l.b16 %v845
        %v914 = vunpack.c.l.b16 %v846
        %v915 = vunpack.c.l.b16 %v847
        %v916 = vunpack.c.l.b16 %v848
        %v917 = vunpack.c.l.b16 %v849
        %v918 = vunpack.c.l.b16 %v850
        %v919 = vunpack.c.l.b16 %v851
        %v920 = vunpack.c.l.b16 %v852
        %v921 = vunpack.c.l.b16 %v853
        %v922 = vunpack.c.l.b16 %v854
        %v923 = vunpack.c.l.b16 %v855
        %v924 = vunpack.c.l.b16 %v856
        %v925 = vunpack.c.l.b16 %v857
        %v926 = vunpack.c.l.b16 %v858
        %v927 = vunpack.c.l.b16 %v859
        %v928 = vunpack.c.l.b16 %v860
        %v929 = vunpack.c.l.b16 %v861
        %v930 = vunpack.c.l.b16 %v862
        %v931 = vunpack.c.l.b16 %v863
        %v932 = vunpack.c.l.b16 %v864
        %v933 = vunpack.c.l.b16 %v865
        %v934 = vunpack.c.l.b16 %v866
        %v935 = vunpack.c.l.b16 %v867
        %v936 = vunpack.c.l.b16 %v868
        %v937 = vpack.c.b16 %v906, %v905
        %v938 = vpack.c.b16 %v908, %v907
        %v939 = vpack.c.b16 %v910, %v909
        %v940 = vpack.c.b16 %v912, %v911
        %v941 = vpack.c.b16 %v914, %v913
        %v942 = vpack.c.b16 %v916, %v915
        %v943 = vpack.c.b16 %v918, %v917
        %v944 = vpack.c.b16 %v920, %v919
        %v945 = vpack.c.b16 %v922, %v921
        %v946 = vpack.c.b16 %v924, %v923
        %v947 = vpack.c.b16 %v926, %v925
        %v948 = vpack.c.b16 %v928, %v927
        %v949 = vpack.c.b16 %v930, %v929
        %v950 = vpack.c.b16 %v932, %v931
        %v951 = vpack.c.b16 %v934, %v933
        %v952 = vpack.c.b16 %v936, %v935
        %969 = vmatpush.bf16.msra.mxu0 %v944
        %970 = vmatpush.bf16.msra.mxu0 %v943
        %971 = vmatpush.bf16.msra.mxu0 %v942
        %972 = vmatpush.bf16.msra.mxu0 %v941
        %973 = vmatpush.bf16.msra.mxu0 %v940
        %974 = vmatpush.bf16.msra.mxu0 %v939
        %975 = vmatpush.bf16.msra.mxu0 %v938
        %976 = vmatpush.bf16.msra.mxu0 %v937
        %977 = vmatmul.bf16.gmra.mxu0 %v833
        %v978 = vpop.f32.mrf.mxu0
        %v979 = vadd.f32 %v871, %v978
        %v980 = vpop.f32.mrf.mxu0
        %v981 = vadd.f32 %v871, %v980
        %982 = vmatmul.bf16.gmra.mxu0 %v835
        %v983 = vpop.f32.mrf.mxu0
        %v984 = vadd.f32 %v871, %v983
        %v985 = vpop.f32.mrf.mxu0
        %v986 = vadd.f32 %v871, %v985
        %987 = vdwg.mxu0
        %988 = vmatpush.bf16.msra.mxu0 %v952
        %989 = vmatpush.bf16.msra.mxu0 %v951
        %990 = vmatpush.bf16.msra.mxu0 %v950
        %991 = vmatpush.bf16.msra.mxu0 %v949
        %992 = vmatpush.bf16.msra.mxu0 %v948
        %993 = vmatpush.bf16.msra.mxu0 %v947
        %994 = vmatpush.bf16.msra.mxu0 %v946
        %995 = vmatpush.bf16.msra.mxu0 %v945
        %996 = vmatmul.bf16.gmra.mxu0 %v834
        %v997 = vpop.f32.mrf.mxu0
        %v998 = vadd.f32 %v979, %v997
        %v999 = vpop.f32.mrf.mxu0
        %v1000 = vadd.f32 %v981, %v999
        %1001 = vmatmul.bf16.gmra.mxu0 %v836
        %v1002 = vpop.f32.mrf.mxu0
        %v1003 = vadd.f32 %v984, %v1002
        %v1004 = vpop.f32.mrf.mxu0
        %v1005 = vadd.f32 %v986, %v1004
        %1006 = vdwg.mxu0
        %v1007 = vmul.f32 %v998, %v998
        %v1008 = vmul.f32 %v1000, %v1000
        %v1009 = vmul.f32 %v1003, %v1003
        %v1010 = vmul.f32 %v1005, %v1005
        %v1011 = vsel %vm366, %v1007, 0.0
        %1012 = vadd.xlane.f32.xlu0 %v1011
        %v1013 = vpop.xlane.xlu0 %1012
        %v1014 = vsel %vm366, %v1008, 0.0
        %1015 = vadd.xlane.f32.xlu0 %v1014
        %v1016 = vpop.xlane.xlu0 %1015
        %v1017 = vsel %vm366, %v1009, 0.0
        %1018 = vadd.xlane.f32.xlu0 %v1017
        %v1019 = vpop.xlane.xlu0 %1018
        %v1020 = vsel %vm366, %v1010, 0.0
        %1021 = vadd.xlane.f32.xlu0 %v1020
        %v1022 = vpop.xlane.xlu0 %1021
        %v1023 = vmax.f32 %v1013, 1e-24
        %v1024 = vmax.f32 %v1016, 1e-24
        %v1025 = vmax.f32 %v1019, 1e-24
        %v1026 = vmax.f32 %v1022, 1e-24
        %v1027 = vrsqrt.pop %v1023
        %v1028 = vmul.f32 %v1027, %v1023
        %v1029 = vmul.f32 %v1028, %v1027
        %v1030 = vmul.f32 0.5, %v1029
        %v1031 = vsub.f32 1.5, %v1030
        %v1032 = vmul.f32 %v1027, %v1031
        %vm1033 = vweird.f32 %v1023
        %vm1034 = vweird.f32 %v1027
        %vm1035 = vmor %vm1033, %vm1034
        %v1036 = vsel %vm1035, %v1027, %v1032
        %v1037 = vrsqrt.pop %v1024
        %v1038 = vmul.f32 %v1037, %v1024
        %v1039 = vmul.f32 %v1038, %v1037
        %v1040 = vmul.f32 0.5, %v1039
        %v1041 = vsub.f32 1.5, %v1040
        %v1042 = vmul.f32 %v1037, %v1041
        %vm1043 = vweird.f32 %v1024
        %vm1044 = vweird.f32 %v1037
        %vm1045 = vmor %vm1043, %vm1044
        %v1046 = vsel %vm1045, %v1037, %v1042
        %v1047 = vrsqrt.pop %v1025
        %v1048 = vmul.f32 %v1047, %v1025
        %v1049 = vmul.f32 %v1048, %v1047
        %v1050 = vmul.f32 0.5, %v1049
        %v1051 = vsub.f32 1.5, %v1050
        %v1052 = vmul.f32 %v1047, %v1051
        %vm1053 = vweird.f32 %v1025
        %vm1054 = vweird.f32 %v1047
        %vm1055 = vmor %vm1053, %vm1054
        %v1056 = vsel %vm1055, %v1047, %v1052
        %v1057 = vrsqrt.pop %v1026
        %v1058 = vmul.f32 %v1057, %v1026
        %v1059 = vmul.f32 %v1058, %v1057
        %v1060 = vmul.f32 0.5, %v1059
        %v1061 = vsub.f32 1.5, %v1060
        %v1062 = vmul.f32 %v1057, %v1061
        %vm1063 = vweird.f32 %v1026
        %vm1064 = vweird.f32 %v1057
        %vm1065 = vmor %vm1063, %vm1064
        %v1066 = vsel %vm1065, %v1057, %v1062
        %v1067 = vmul.f32 %v998, %v1036
        %v1068 = vmul.f32 %v1000, %v1046
        %v1069 = vmul.f32 %v1003, %v1056
        %v1070 = vmul.f32 %v1005, %v1066
        %1071 = vst.msk [vmem:[%s289] sm:$0xff] %vm366, %v1067
        %1072 = vst.msk [vmem:[%s289 + $0x8] sm:$0xff] %vm366, %v1068
        %1073 = vst.msk [vmem:[%s289 + $0x10] sm:$0xff] %vm366, %v1069
        %1074 = vst.msk [vmem:[%s289 + $0x18] sm:$0xff] %vm366, %v1070
        %s1075 = sand.u32 %s182, 1
        %s1076 = scalar_lea.sflag [#allocation4], %s1075
        %s1077 = sand.u32 %s182, 1
        %s1078 = smul.addr %s1077, 32
        %s1079 = scalar_lea.vmem [#allocation5], %s1078
        // Predicated region
        $region53: #{tpu_custom_call.1} parent=47 // pred_check
          %p1080 = pneg %p192
        $region54: #{tpu_custom_call.1} parent=47 // pred_check_branch
          %1082 = sbr.rel (%p1080) target = $region56
        $region55: #{tpu_custom_call.1} parent=47 // pred_region
          %s1083 = smul.u32 4, %s22
          %1085 = vsyncadd %s1076, 0
          %s1086 = smul.addr %s1083, 8
          %s1087 = scalar_lea.hbm %s7, %s1086
          %s1088 = sshll.u32 %s1079, 4
          %s1089 = int_to_ptr.vmem [resolvable:$true] %s1088
          %s1090 = sshll.u32 %s1087, 4
          %s1091 = int_to_ptr.hbm [resolvable:$true] %s1090
          %1096 = dma.vmem_to_hbm [thread:$0]  %s1089, 512, %s1091, %s1076, 128, 128, 8
        $region56: #{tpu_custom_call.1} parent=47 // pred_fallthru
          _
      $region48: #{tpu_custom_call.1} parent=5 // pred_fallthru
        _
      %p1097 = scmp.le.s32.totalorder 2, %s17
      // Predicated region
      $region57: #{tpu_custom_call.1} parent=5 // pred_check
        %p1098 = pneg %p1097
      $region58: #{tpu_custom_call.1} parent=5 // pred_check_branch
        %1100 = sbr.rel (%p1098) target = $region60
      $region59: #{tpu_custom_call.1} parent=5 // pred_region
        %s1101 = ssub.s32 %s17, 2
        // Predicated region
        $region61: #{tpu_custom_call.1} parent=59 // pred_check
          %p1102 = pneg %p198
        $region62: #{tpu_custom_call.1} parent=59 // pred_check_branch
          %1104 = sbr.rel (%p1102) target = $region64
        $region63: #{tpu_custom_call.1} parent=59 // pred_region
          %s1105 = sand.u32 %s183, 1
          %s1106 = scalar_lea.sflag [#allocation4], %s1105
          %s1107 = sand.u32 %s183, 1
          %s1108 = smul.addr %s1107, 32
          %s1109 = scalar_lea.vmem [#allocation5], %s1108
          %1111 = dma.done %s1106, 512
        $region64: #{tpu_custom_call.1} parent=59 // pred_fallthru
          _
      $region60: #{tpu_custom_call.1} parent=5 // pred_fallthru
        _
    $region6: #{tpu_custom_call.1} parent=1 // loop_footer
      %s21 = sadd.s32 1, %s17
    $region7: #{tpu_custom_call.1} parent=1 // loop_footer_branch
      %16 = sbr.rel target = $region3
    $region8: #{tpu_custom_call.1} parent=1 // loop_exit
      _
    %1112 = vsyncpa [#allocation3], 1
    %s1113 = scalar_lea.sflag [#allocation3], 1
    %1114 = vsyncpa %s1113, 1
    %1115 = vsyncpa [#allocation4], 1
    %s1116 = scalar_lea.sflag [#allocation4], 1
    %1117 = vsyncpa %s1116, 1

</llo_original>
